<compile_context>
chip_gen: v7x
topology: tpu7x:2x2x1
jax: 0.10.0
libtpu: 0.0.40
codegen_flags: <defaults>
</compile_context>

<pallas_src>
import functools

import jax
import jax.numpy as jnp
from jax.experimental import pallas as pl
from jax.experimental.pallas import tpu as pltpu


_TILE_B_MAX = 2048   # rows per grid step; fits comfortably in VMEM on v5e/v6e/v7x
_H4_PAD = 128        # fc4 output width (64) zero-padded to full lane width


def _round_up(x, m):
    return ((x + m - 1) // m) * m


# --------------------------------------------------------------------------
# Kernel
# --------------------------------------------------------------------------
def _gasflow_kernel(
    x_ref,
    w1_ref, b1_ref,
    w2_ref, b2_ref,
    w3_ref, b3_ref,
    w4_ref, b4_ref,
    wh_ref, bh_ref,      # fused head: (128, 2) weights, (1, 2) bias
    out_ref,             # (tile_b, 2) -> col 0 = logC, col 1 = n
):
    def dense_relu(h, w_ref, b_ref):
        z = jnp.dot(h, w_ref[...], preferred_element_type=jnp.float32) + b_ref[...]
        return jnp.maximum(z, 0.0).astype(jnp.bfloat16)

    h = x_ref[...]                        # bf16 [tile_b, input_dim]
    h = dense_relu(h, w1_ref, b1_ref)     # [tile_b, 256]
    h = dense_relu(h, w2_ref, b2_ref)     # [tile_b, 128]
    h = dense_relu(h, w3_ref, b3_ref)     # [tile_b, 128]
    h = dense_relu(h, w4_ref, b4_ref)     # [tile_b, 128] (cols 64..127 exactly 0)

    head = jnp.dot(h, wh_ref[...], preferred_element_type=jnp.float32) + bh_ref[...]
    col = jax.lax.broadcasted_iota(jnp.int32, head.shape, 1)
    sig = jax.nn.sigmoid(head) * 0.5 + 0.5
    out_ref[...] = jnp.where(col == 0, head, sig).astype(out_ref.dtype)


# --------------------------------------------------------------------------
# Wrapper
# --------------------------------------------------------------------------
@functools.partial(jax.jit, static_argnames=("tile_b_max",))
def gasflow_forward(x, kparams, tile_b_max=_TILE_B_MAX):
    """x: [B, input_dim] float32. kparams from prepare_kernel_params.

    Returns (logC [B, 1], n [B, 1]) in float32.
    """
    B, input_dim = x.shape
    (w1, b1, w2, b2, w3, b3, w4, b4, wh, bh) = kparams

    # Pad batch so the block shape divides it (and is a multiple of 8 sublanes).
    b_pad = _round_up(max(B, 8), 8)
    tile_b = min(tile_b_max, b_pad)
    b_pad = _round_up(b_pad, tile_b)
    grid = (b_pad // tile_b,)

    x_p = x if b_pad == B else jnp.pad(x, ((0, b_pad - B), (0, 0)))
    x_p = x_p.astype(jnp.bfloat16)

    # Weights/biases: full-array blocks, constant index_map -> VMEM-resident.
    const = lambda a: pl.BlockSpec(a.shape, lambda i: (0,) * a.ndim)

    flops = 2 * b_pad * (input_dim * 256 + 256 * 128 + 128 * 128
                         + 128 * _H4_PAD + _H4_PAD * 2)
    param_bytes = sum(int(a.size) * a.dtype.itemsize for a in kparams)
    bytes_accessed = b_pad * input_dim * 2 + b_pad * 2 * 4 + param_bytes

    out = pl.pallas_call(
        _gasflow_kernel,
        grid=grid,
        in_specs=[
            pl.BlockSpec((tile_b, input_dim), lambda i: (i, 0)),
            const(w1), const(b1),
            const(w2), const(b2),
            const(w3), const(b3),
            const(w4), const(b4),
            const(wh), const(bh),
        ],
        out_specs=pl.BlockSpec((tile_b, 2), lambda i: (i, 0)),
        out_shape=jax.ShapeDtypeStruct((b_pad, 2), jnp.float32),
        compiler_params=pltpu.CompilerParams(
            dimension_semantics=("parallel",),
            vmem_limit_bytes=32 * 1024 * 1024,
        ),
        cost_estimate=pl.CostEstimate(
            flops=int(flops),
            transcendentals=int(2 * b_pad),
            bytes_accessed=int(bytes_accessed),
        ),
    )(x_p, w1, b1, w2, b2, w3, b3, w4, b4, wh, bh)

    logc = out[:B, 0:1]
    n = out[:B, 1:2]
    return logc, n


# --------------------------------------------------------------------------
# Parameter handling
# --------------------------------------------------------------------------
def init_params(key, input_dim):
    """Logical params (Kaiming-uniform-ish like nn.Linear), weights stored as
    (in_features, out_features), biases as (1, out_features)."""
    dims = [(input_dim, 256), (256, 128), (128, 128), (128, 64), (64, 1), (64, 1)]
    params = []
    for fan_in, fan_out in dims:
        kw, kb, key = jax.random.split(key, 3)
        bound = 1.0 / jnp.sqrt(fan_in)
        w = jax.random.uniform(kw, (fan_in, fan_out), jnp.float32, -bound, bound)
        b = jax.random.uniform(kb, (1, fan_out), jnp.float32, -bound, bound)
        params += [w, b]
    return tuple(params)


def prepare_kernel_params(params):
    """One-time transform: pad fc4/head to 128 lanes, fuse the two heads into a
    single (128, 2) matmul, and cast weights (not biases) to bf16."""
    (w1, b1, w2, b2, w3, b3, w4, b4, wc, bc, wn, bn) = params

    w4p = jnp.pad(w4, ((0, 0), (0, _H4_PAD - w4.shape[1])))
    b4p = jnp.pad(b4, ((0, 0), (0, _H4_PAD - b4.shape[1])))
    wh = jnp.pad(jnp.concatenate([wc, wn], axis=1),
                 ((0, _H4_PAD - wc.shape[0]), (0, 0)))
    bh = jnp.concatenate([bc, bn], axis=1)

    bf = lambda a: a.astype(jnp.bfloat16)
    return (bf(w1), b1, bf(w2), b2, bf(w3), b3, bf(w4p), b4p, bf(wh), bh)


# --------------------------------------------------------------------------
# References
# --------------------------------------------------------------------------
def reference_forward(x, params, matmul_dtype=jnp.float32):
    """Pure-JAX reference. matmul_dtype=bf16 mimics the kernel's MXU input
    precision (products exact, f32 accumulation)."""
    (w1, b1, w2, b2, w3, b3, w4, b4, wc, bc, wn, bn) = params

    def dense(h, w, b):
        hq = h.astype(matmul_dtype).astype(jnp.float32)
        wq = w.astype(matmul_dtype).astype(jnp.float32)
        return jnp.dot(hq, wq, precision=jax.lax.Precision.HIGHEST) + b

    h = jax.nn.relu(dense(x, w1, b1))
    h = jax.nn.relu(dense(h, w2, b2))
    h = jax.nn.relu(dense(h, w3, b3))
    h = jax.nn.relu(dense(h, w4, b4))
    logc = dense(h, wc, bc)
    n = jax.nn.sigmoid(dense(h, wn, bn)) * 0.5 + 0.5
    return logc, n


# --------------------------------------------------------------------------
# Test
# --------------------------------------------------------------------------
if __name__ == "__main__":
    key = jax.random.PRNGKey(0)
    kx, kx2, kp = jax.random.split(key, 3)

    input_dim = 16
    params = init_params(kp, input_dim)
    kparams = prepare_kernel_params(params)

    # --- case 1: small multiple-of-8 batch ---
    B = 8
    x = jax.random.normal(kx, (B, input_dim), jnp.float32)
    logc, n = gasflow_forward(x, kparams)
    jax.block_until_ready((logc, n))
    assert logc.shape == (B, 1) and n.shape == (B, 1)

    logc_bf, n_bf = reference_forward(x, params, matmul_dtype=jnp.bfloat16)
    logc_f32, n_f32 = reference_forward(x, params, matmul_dtype=jnp.float32)
    assert jnp.allclose(logc, logc_bf, atol=5e-3, rtol=5e-3)
    assert jnp.allclose(n, n_bf, atol=5e-3, rtol=5e-3)
    assert jnp.allclose(logc, logc_f32, atol=5e-2, rtol=5e-2)
    assert jnp.allclose(n, n_f32, atol=5e-2, rtol=5e-2)

    # --- case 2: batch not a multiple of 8 (exercises padding / tail handling) ---
    B2 = 20
    x2 = jax.random.normal(kx2, (B2, input_dim), jnp.float32)
    logc2, n2 = gasflow_forward(x2, kparams)
    jax.block_until_ready((logc2, n2))
    assert logc2.shape == (B2, 1) and n2.shape == (B2, 1)

    logc2_bf, n2_bf = reference_forward(x2, params, matmul_dtype=jnp.bfloat16)
    assert jnp.allclose(logc2, logc2_bf, atol=5e-3, rtol=5e-3)
    assert jnp.allclose(n2, n2_bf, atol=5e-3, rtol=5e-3)

    print("KERNEL_OK")
</pallas_src>

<mosaic_0001>
module attributes {stable_mosaic.version = 11 : i64} {
  func.func @_gasflow_kernel(%arg0: i32, %arg1: memref<8x16xbf16, #tpu.memory_space<vmem>>, %arg2: memref<16x256xbf16, #tpu.memory_space<vmem>>, %arg3: memref<1x256xf32, #tpu.memory_space<vmem>>, %arg4: memref<256x128xbf16, #tpu.memory_space<vmem>>, %arg5: memref<1x128xf32, #tpu.memory_space<vmem>>, %arg6: memref<128x128xbf16, #tpu.memory_space<vmem>>, %arg7: memref<1x128xf32, #tpu.memory_space<vmem>>, %arg8: memref<128x128xbf16, #tpu.memory_space<vmem>>, %arg9: memref<1x128xf32, #tpu.memory_space<vmem>>, %arg10: memref<128x2xbf16, #tpu.memory_space<vmem>>, %arg11: memref<1x2xf32, #tpu.memory_space<vmem>>, %arg12: memref<8x2xf32, #tpu.memory_space<vmem>>) attributes {dimension_semantics = [#tpu.dimension_semantics<parallel>], iteration_bounds = array<i64: 1>, scalar_prefetch = 0 : i64, scratch_operands = 0 : i64, tpu.core_type = #tpu.core_type<tc>, window_params = [{transform_indices = @transform_0, window_bounds = array<i64: 8, 16>}, {pipeline_mode = #tpu.pipeline_mode<synchronous>, transform_indices = @transform_1, window_bounds = array<i64: 16, 256>}, {pipeline_mode = #tpu.pipeline_mode<synchronous>, transform_indices = @transform_2, window_bounds = array<i64: 1, 256>}, {pipeline_mode = #tpu.pipeline_mode<synchronous>, transform_indices = @transform_3, window_bounds = array<i64: 256, 128>}, {pipeline_mode = #tpu.pipeline_mode<synchronous>, transform_indices = @transform_4, window_bounds = array<i64: 1, 128>}, {pipeline_mode = #tpu.pipeline_mode<synchronous>, transform_indices = @transform_5, window_bounds = array<i64: 128, 128>}, {pipeline_mode = #tpu.pipeline_mode<synchronous>, transform_indices = @transform_6, window_bounds = array<i64: 1, 128>}, {pipeline_mode = #tpu.pipeline_mode<synchronous>, transform_indices = @transform_7, window_bounds = array<i64: 128, 128>}, {pipeline_mode = #tpu.pipeline_mode<synchronous>, transform_indices = @transform_8, window_bounds = array<i64: 1, 128>}, {pipeline_mode = #tpu.pipeline_mode<synchronous>, transform_indices = @transform_9, window_bounds = array<i64: 128, 2>}, {pipeline_mode = #tpu.pipeline_mode<synchronous>, transform_indices = @transform_10, window_bounds = array<i64: 1, 2>}, {transform_indices = @transform_11, window_bounds = array<i64: 8, 2>}]} {
    %c0 = arith.constant 0 : index
    %c0_0 = arith.constant 0 : index
    %0 = vector.load %arg1[%c0, %c0_0] : memref<8x16xbf16, #tpu.memory_space<vmem>>, vector<8x16xbf16>
    %c0_1 = arith.constant 0 : index
    %c0_2 = arith.constant 0 : index
    %1 = vector.load %arg2[%c0_1, %c0_2] : memref<16x256xbf16, #tpu.memory_space<vmem>>, vector<16x256xbf16>
    %cst = arith.constant dense<0.000000e+00> : vector<8x256xf32>
    %2 = tpu.matmul %0, %1, %cst {dimension_numbers = #tpu.dot_dimension_numbers<[1], [0], [0], [1], [0, 0, 1, 1], [], []>} : vector<8x16xbf16>, vector<16x256xbf16>, vector<8x256xf32> -> vector<8x256xf32>
    %c0_3 = arith.constant 0 : index
    %c0_4 = arith.constant 0 : index
    %3 = vector.load %arg3[%c0_3, %c0_4] : memref<1x256xf32, #tpu.memory_space<vmem>>, vector<1x256xf32>
    %4 = vector.broadcast %3 : vector<1x256xf32> to vector<8x256xf32>
    %5 = arith.addf %2, %4 : vector<8x256xf32>
    %cst_5 = arith.constant 0.000000e+00 : f32
    %6 = vector.broadcast %cst_5 : f32 to vector<8x256xf32>
    %7 = arith.maximumf %5, %6 : vector<8x256xf32>
    %8 = arith.truncf %7 : vector<8x256xf32> to vector<8x256xbf16>
    %c0_6 = arith.constant 0 : index
    %c0_7 = arith.constant 0 : index
    %9 = vector.load %arg4[%c0_6, %c0_7] : memref<256x128xbf16, #tpu.memory_space<vmem>>, vector<256x128xbf16>
    %cst_8 = arith.constant dense<0.000000e+00> : vector<8x128xf32>
    %10 = tpu.matmul %8, %9, %cst_8 {dimension_numbers = #tpu.dot_dimension_numbers<[1], [0], [0], [1], [0, 0, 1, 1], [], []>} : vector<8x256xbf16>, vector<256x128xbf16>, vector<8x128xf32> -> vector<8x128xf32>
    %c0_9 = arith.constant 0 : index
    %c0_10 = arith.constant 0 : index
    %11 = vector.load %arg5[%c0_9, %c0_10] : memref<1x128xf32, #tpu.memory_space<vmem>>, vector<1x128xf32>
    %12 = vector.broadcast %11 : vector<1x128xf32> to vector<8x128xf32>
    %13 = arith.addf %10, %12 : vector<8x128xf32>
    %cst_11 = arith.constant 0.000000e+00 : f32
    %14 = vector.broadcast %cst_11 : f32 to vector<8x128xf32>
    %15 = arith.maximumf %13, %14 : vector<8x128xf32>
    %16 = arith.truncf %15 : vector<8x128xf32> to vector<8x128xbf16>
    %c0_12 = arith.constant 0 : index
    %c0_13 = arith.constant 0 : index
    %17 = vector.load %arg6[%c0_12, %c0_13] : memref<128x128xbf16, #tpu.memory_space<vmem>>, vector<128x128xbf16>
    %cst_14 = arith.constant dense<0.000000e+00> : vector<8x128xf32>
    %18 = tpu.matmul %16, %17, %cst_14 {dimension_numbers = #tpu.dot_dimension_numbers<[1], [0], [0], [1], [0, 0, 1, 1], [], []>} : vector<8x128xbf16>, vector<128x128xbf16>, vector<8x128xf32> -> vector<8x128xf32>
    %c0_15 = arith.constant 0 : index
    %c0_16 = arith.constant 0 : index
    %19 = vector.load %arg7[%c0_15, %c0_16] : memref<1x128xf32, #tpu.memory_space<vmem>>, vector<1x128xf32>
    %20 = vector.broadcast %19 : vector<1x128xf32> to vector<8x128xf32>
    %21 = arith.addf %18, %20 : vector<8x128xf32>
    %cst_17 = arith.constant 0.000000e+00 : f32
    %22 = vector.broadcast %cst_17 : f32 to vector<8x128xf32>
    %23 = arith.maximumf %21, %22 : vector<8x128xf32>
    %24 = arith.truncf %23 : vector<8x128xf32> to vector<8x128xbf16>
    %c0_18 = arith.constant 0 : index
    %c0_19 = arith.constant 0 : index
    %25 = vector.load %arg8[%c0_18, %c0_19] : memref<128x128xbf16, #tpu.memory_space<vmem>>, vector<128x128xbf16>
    %cst_20 = arith.constant dense<0.000000e+00> : vector<8x128xf32>
    %26 = tpu.matmul %24, %25, %cst_20 {dimension_numbers = #tpu.dot_dimension_numbers<[1], [0], [0], [1], [0, 0, 1, 1], [], []>} : vector<8x128xbf16>, vector<128x128xbf16>, vector<8x128xf32> -> vector<8x128xf32>
    %c0_21 = arith.constant 0 : index
    %c0_22 = arith.constant 0 : index
    %27 = vector.load %arg9[%c0_21, %c0_22] : memref<1x128xf32, #tpu.memory_space<vmem>>, vector<1x128xf32>
    %28 = vector.broadcast %27 : vector<1x128xf32> to vector<8x128xf32>
    %29 = arith.addf %26, %28 : vector<8x128xf32>
    %cst_23 = arith.constant 0.000000e+00 : f32
    %30 = vector.broadcast %cst_23 : f32 to vector<8x128xf32>
    %31 = arith.maximumf %29, %30 : vector<8x128xf32>
    %32 = arith.truncf %31 : vector<8x128xf32> to vector<8x128xbf16>
    %c0_24 = arith.constant 0 : index
    %c0_25 = arith.constant 0 : index
    %33 = vector.load %arg10[%c0_24, %c0_25] : memref<128x2xbf16, #tpu.memory_space<vmem>>, vector<128x2xbf16>
    %cst_26 = arith.constant dense<0.000000e+00> : vector<8x2xf32>
    %34 = tpu.matmul %32, %33, %cst_26 {dimension_numbers = #tpu.dot_dimension_numbers<[1], [0], [0], [1], [0, 0, 1, 1], [], []>} : vector<8x128xbf16>, vector<128x2xbf16>, vector<8x2xf32> -> vector<8x2xf32>
    %c0_27 = arith.constant 0 : index
    %c0_28 = arith.constant 0 : index
    %35 = vector.load %arg11[%c0_27, %c0_28] : memref<1x2xf32, #tpu.memory_space<vmem>>, vector<1x2xf32>
    %36 = vector.broadcast %35 : vector<1x2xf32> to vector<8x2xf32>
    %37 = arith.addf %34, %36 : vector<8x2xf32>
    %38 = tpu.iota {dimensions = array<i32: 1>} : vector<8x2xi32>
    %39 = arith.negf %37 : vector<8x2xf32>
    %40 = math.exp %39 : vector<8x2xf32>
    %cst_29 = arith.constant 1.000000e+00 : f32
    %41 = vector.broadcast %cst_29 : f32 to vector<8x2xf32>
    %42 = arith.addf %41, %40 : vector<8x2xf32>
    %43 = arith.divf %41, %42 : vector<8x2xf32>
    %cst_30 = arith.constant 5.000000e-01 : f32
    %44 = vector.broadcast %cst_30 : f32 to vector<8x2xf32>
    %45 = arith.mulf %43, %44 : vector<8x2xf32>
    %cst_31 = arith.constant 5.000000e-01 : f32
    %46 = vector.broadcast %cst_31 : f32 to vector<8x2xf32>
    %47 = arith.addf %45, %46 : vector<8x2xf32>
    %c0_i32 = arith.constant 0 : i32
    %48 = vector.broadcast %c0_i32 : i32 to vector<8x2xi32>
    %49 = arith.cmpi eq, %38, %48 : vector<8x2xi32>
    %50 = arith.select %49, %37, %47 : vector<8x2xi1>, vector<8x2xf32>
    %c0_32 = arith.constant 0 : index
    %c0_33 = arith.constant 0 : index
    %51 = vector.load %arg12[%c0_32, %c0_33] : memref<8x2xf32, #tpu.memory_space<vmem>>, vector<8x2xf32>
    tpu.vector_store %arg12[%c0_32, %c0_33], %50 {strides = array<i32>} : memref<8x2xf32, #tpu.memory_space<vmem>>, vector<8x2xf32>,
    return
  }
  func.func @transform_0(%arg0: i32) -> (i32, i32) {
    %c0_i32 = arith.constant 0 : i32
    %c0_i32_0 = arith.constant 0 : i32
    return %arg0, %c0_i32 : i32, i32
  }
  func.func @transform_1(%arg0: i32) -> (i32, i32) {
    %c0_i32 = arith.constant 0 : i32
    %c0_i32_0 = arith.constant 0 : i32
    %c0_i32_1 = arith.constant 0 : i32
    return %c0_i32, %c0_i32_0 : i32, i32
  }
  func.func @transform_2(%arg0: i32) -> (i32, i32) {
    %c0_i32 = arith.constant 0 : i32
    %c0_i32_0 = arith.constant 0 : i32
    %c0_i32_1 = arith.constant 0 : i32
    return %c0_i32, %c0_i32_0 : i32, i32
  }
  func.func @transform_3(%arg0: i32) -> (i32, i32) {
    %c0_i32 = arith.constant 0 : i32
    %c0_i32_0 = arith.constant 0 : i32
    %c0_i32_1 = arith.constant 0 : i32
    return %c0_i32, %c0_i32_0 : i32, i32
  }
  func.func @transform_4(%arg0: i32) -> (i32, i32) {
    %c0_i32 = arith.constant 0 : i32
    %c0_i32_0 = arith.constant 0 : i32
    %c0_i32_1 = arith.constant 0 : i32
    return %c0_i32, %c0_i32_0 : i32, i32
  }
  func.func @transform_5(%arg0: i32) -> (i32, i32) {
    %c0_i32 = arith.constant 0 : i32
    %c0_i32_0 = arith.constant 0 : i32
    %c0_i32_1 = arith.constant 0 : i32
    return %c0_i32, %c0_i32_0 : i32, i32
  }
  func.func @transform_6(%arg0: i32) -> (i32, i32) {
    %c0_i32 = arith.constant 0 : i32
    %c0_i32_0 = arith.constant 0 : i32
    %c0_i32_1 = arith.constant 0 : i32
    return %c0_i32, %c0_i32_0 : i32, i32
  }
  func.func @transform_7(%arg0: i32) -> (i32, i32) {
    %c0_i32 = arith.constant 0 : i32
    %c0_i32_0 = arith.constant 0 : i32
    %c0_i32_1 = arith.constant 0 : i32
    return %c0_i32, %c0_i32_0 : i32, i32
  }
  func.func @transform_8(%arg0: i32) -> (i32, i32) {
    %c0_i32 = arith.constant 0 : i32
    %c0_i32_0 = arith.constant 0 : i32
    %c0_i32_1 = arith.constant 0 : i32
    return %c0_i32, %c0_i32_0 : i32, i32
  }
  func.func @transform_9(%arg0: i32) -> (i32, i32) {
    %c0_i32 = arith.constant 0 : i32
    %c0_i32_0 = arith.constant 0 : i32
    %c0_i32_1 = arith.constant 0 : i32
    return %c0_i32, %c0_i32_0 : i32, i32
  }
  func.func @transform_10(%arg0: i32) -> (i32, i32) {
    %c0_i32 = arith.constant 0 : i32
    %c0_i32_0 = arith.constant 0 : i32
    %c0_i32_1 = arith.constant 0 : i32
    return %c0_i32, %c0_i32_0 : i32, i32
  }
  func.func @transform_11(%arg0: i32) -> (i32, i32) {
    %c0_i32 = arith.constant 0 : i32
    %c0_i32_0 = arith.constant 0 : i32
    return %arg0, %c0_i32 : i32, i32
  }
}

</mosaic_0001>

<llo_original>
// kernel: gasflow_forward.1
$region0: #{gasflow_forward.1}
  #allocation0 [shape = 'u32[]', space=smem, size = 0x4, offset = 0x4, fixed_abs, tag = 'smem constant byte address 0x4 - core index']
  #allocation1 [shape = 'u32[144,128]{1,0:T(1,128)}', space=vmem, size = 0x12000, scoped, tag = 'internal scratch']
  %s0 = inlined_call_operand.vmem [shape: bf16[8,16], index: 0, kind: input, shape index: {}]
  %s1 = inlined_call_operand.vmem [shape: bf16[16,256], index: 1, kind: input, shape index: {}]
  %s2 = inlined_call_operand.vmem [shape: f32[1,256], index: 2, kind: input, shape index: {}]
  %s3 = inlined_call_operand.hbm [shape: bf16[256,128], index: 3, kind: input, shape index: {}]
  %s4 = inlined_call_operand.vmem [shape: f32[1,128], index: 4, kind: input, shape index: {}]
  %s5 = inlined_call_operand.vmem [shape: bf16[128,128], index: 5, kind: input, shape index: {}]
  %s6 = inlined_call_operand.vmem [shape: f32[1,128], index: 6, kind: input, shape index: {}]
  %s7 = inlined_call_operand.hbm [shape: bf16[128,128], index: 7, kind: input, shape index: {}]
  %s8 = inlined_call_operand.vmem [shape: f32[1,128], index: 8, kind: input, shape index: {}]
  %s9 = inlined_call_operand.vmem [shape: bf16[128,2], index: 9, kind: input, shape index: {}]
  %s10 = inlined_call_operand.vmem [shape: f32[1,2], index: 10, kind: input, shape index: {}]
  %s11 = inlined_call_operand.vmem [shape: f32[8,2], index: 11, kind: output, shape index: {}]
  %s12 = sld [smem:[#allocation0]]
  $region62: #{gasflow_forward.1} parent=0
    _
  %s14 = ssub.s32 1, %s12
  %s15 = scalar_select 0, %s14, %s12
  $region1: #{gasflow_forward.1} parent=0
    #allocation2 [shape = 'u8[65536]{0}', space=vmem, size = 0x10000, scoped, tag = 'input window, operand 3, single buffered']
    #allocation3 [shape = 's32[1]{0}', space=sflag, size = 0x4, scoped, tag = 'scoped memory for gasflow_forward.1']
    #allocation4 [shape = 'u8[32768]{0}', space=vmem, size = 0x8000, scoped, tag = 'input window, operand 7, single buffered']
    #allocation5 [shape = 's32[1]{0}', space=sflag, size = 0x4, scoped, tag = 'scoped memory for gasflow_forward.1']
    %16 = vsyncpa [#allocation3], 0
    %17 = vsyncpa [#allocation5], 0
    // Predicated region
    $region2: #{gasflow_forward.1} parent=1 // pred_check
      _
    $region3: #{gasflow_forward.1} parent=1 // pred_check_branch
      %19 = sbr.rel (0) target = $region5
    $region4: #{gasflow_forward.1} parent=1 // pred_region
      _
    $region5: #{gasflow_forward.1} parent=1 // pred_fallthru
      _
    // Predicated region
    $region6: #{gasflow_forward.1} parent=1 // pred_check
      _
    $region7: #{gasflow_forward.1} parent=1 // pred_check_branch
      %21 = sbr.rel (0) target = $region9
    $region8: #{gasflow_forward.1} parent=1 // pred_region
      _
    $region9: #{gasflow_forward.1} parent=1 // pred_fallthru
      _
    // Predicated region
    $region10: #{gasflow_forward.1} parent=1 // pred_check
      _
    $region11: #{gasflow_forward.1} parent=1 // pred_check_branch
      %23 = sbr.rel (0) target = $region13
    $region12: #{gasflow_forward.1} parent=1 // pred_region
      _
    $region13: #{gasflow_forward.1} parent=1 // pred_fallthru
      _
    // Predicated region
    $region14: #{gasflow_forward.1} parent=1 // pred_check
      _
    $region15: #{gasflow_forward.1} parent=1 // pred_check_branch
      %25 = sbr.rel (0) target = $region17
    $region16: #{gasflow_forward.1} parent=1 // pred_region
      %s27 = ssub.s32 2048, 2048
      %28 = vsyncadd [#allocation3], %s27
      %s29 = sshll.u32 [#allocation2], 4
      %s30 = int_to_ptr.vmem [resolvable:$true] %s29
      %35 = dma.hbm_to_vmem [thread:$0]  %s3, 2048, %s30, [#allocation3], 64, 64, 4
    $region17: #{gasflow_forward.1} parent=1 // pred_fallthru
      _
    // Predicated region
    $region18: #{gasflow_forward.1} parent=1 // pred_check
      _
    $region19: #{gasflow_forward.1} parent=1 // pred_check_branch
      %37 = sbr.rel (0) target = $region21
    $region20: #{gasflow_forward.1} parent=1 // pred_region
      _
    $region21: #{gasflow_forward.1} parent=1 // pred_fallthru
      _
    // Predicated region
    $region22: #{gasflow_forward.1} parent=1 // pred_check
      _
    $region23: #{gasflow_forward.1} parent=1 // pred_check_branch
      %39 = sbr.rel (0) target = $region25
    $region24: #{gasflow_forward.1} parent=1 // pred_region
      _
    $region25: #{gasflow_forward.1} parent=1 // pred_fallthru
      _
    // Predicated region
    $region26: #{gasflow_forward.1} parent=1 // pred_check
      _
    $region27: #{gasflow_forward.1} parent=1 // pred_check_branch
      %41 = sbr.rel (0) target = $region29
    $region28: #{gasflow_forward.1} parent=1 // pred_region
      _
    $region29: #{gasflow_forward.1} parent=1 // pred_fallthru
      _
    // Predicated region
    $region30: #{gasflow_forward.1} parent=1 // pred_check
      _
    $region31: #{gasflow_forward.1} parent=1 // pred_check_branch
      %43 = sbr.rel (0) target = $region33
    $region32: #{gasflow_forward.1} parent=1 // pred_region
      %s45 = ssub.s32 1024, 1024
      %46 = vsyncadd [#allocation5], %s45
      %s47 = sshll.u32 [#allocation4], 4
      %s48 = int_to_ptr.vmem [resolvable:$true] %s47
      %53 = dma.hbm_to_vmem [thread:$0]  %s7, 1024, %s48, [#allocation5], 64, 64, 4
    $region33: #{gasflow_forward.1} parent=1 // pred_fallthru
      _
    // Predicated region
    $region34: #{gasflow_forward.1} parent=1 // pred_check
      _
    $region35: #{gasflow_forward.1} parent=1 // pred_check_branch
      %55 = sbr.rel (0) target = $region37
    $region36: #{gasflow_forward.1} parent=1 // pred_region
      _
    $region37: #{gasflow_forward.1} parent=1 // pred_fallthru
      _
    // Predicated region
    $region38: #{gasflow_forward.1} parent=1 // pred_check
      _
    $region39: #{gasflow_forward.1} parent=1 // pred_check_branch
      %57 = sbr.rel (0) target = $region41
    $region40: #{gasflow_forward.1} parent=1 // pred_region
      _
    $region41: #{gasflow_forward.1} parent=1 // pred_fallthru
      _
    // Predicated region
    $region42: #{gasflow_forward.1} parent=1 // pred_check
      _
    $region43: #{gasflow_forward.1} parent=1 // pred_check_branch
      %59 = sbr.rel (0) target = $region45
    $region44: #{gasflow_forward.1} parent=1 // pred_region
      _
    $region45: #{gasflow_forward.1} parent=1 // pred_fallthru
      _
    // Predicated region
    $region46: #{gasflow_forward.1} parent=1 // pred_check
      _
    $region47: #{gasflow_forward.1} parent=1 // pred_check_branch
      %61 = sbr.rel (0) target = $region49
    $region48: #{gasflow_forward.1} parent=1 // pred_region
      %62 = dma.done [#allocation3], 2048
    $region49: #{gasflow_forward.1} parent=1 // pred_fallthru
      _
    // Predicated region
    $region50: #{gasflow_forward.1} parent=1 // pred_check
      _
    $region51: #{gasflow_forward.1} parent=1 // pred_check_branch
      %64 = sbr.rel (0) target = $region53
    $region52: #{gasflow_forward.1} parent=1 // pred_region
      %65 = dma.done [#allocation5], 1024
    $region53: #{gasflow_forward.1} parent=1 // pred_fallthru
      _
    %v67 = vld [vmem:[%s0] sm:$0xf]
    %v68 = vld [vmem:[%s1] sm:$0xff]
    %v69 = vld [vmem:[%s1 + $0x8] sm:$0xff]
    %v70 = vld [vmem:[%s2] sm:$0x3]
    %v72 = vlaneseq
    %v73 = vshrl.u32 %v72, 7
    %v74 = vsub.s32 0, %v73
    %v75 = vrot.slane %v70, %v74
    %v76 = vlaneseq
    %v77 = vshrl.u32 %v76, 7
    %v78 = vsub.s32 1, %v77
    %v79 = vrot.slane %v70, %v78
    %v84 = vunpack.c.l.b16 %v68
    %v85 = vunpack.c.h.b16 %v68
    %v86 = vunpack.c.l.b16 %v69
    %v87 = vunpack.c.h.b16 %v69
    %v88 = vpack.c.b16 %v86, %v84
    %v89 = vpack.c.b16 %v87, %v85
    %vm92 = vcmask 130048
    %v94 = vsel %vm92, %v67, 0
    %96 = vmatprep.subr.bf16.mxu0 %v89
    %97 = vmatpush1.bf16.msra.mxu0 %v88
    %98 = vmatprep.subr.bf16.mxu0 0
    %99 = vmatpush1.bf16.msra.mxu0 0
    %100 = vmatprep.subr.bf16.mxu0 0
    %101 = vmatpush1.bf16.msra.mxu0 0
    %102 = vmatprep.subr.bf16.mxu0 0
    %103 = vmatpush1.bf16.msra.mxu0 0
    %104 = vmatprep.subr.bf16.mxu0 0
    %105 = vmatpush1.bf16.msra.mxu0 0
    %106 = vmatprep.subr.bf16.mxu0 0
    %107 = vmatpush1.bf16.msra.mxu0 0
    %108 = vmatprep.subr.bf16.mxu0 0
    %109 = vmatpush1.bf16.msra.mxu0 0
    %110 = vmatprep.subr.bf16.mxu0 0
    %111 = vmatpush1.bf16.msra.mxu0 0
    %112 = vmatprep.subr.bf16.mxu0 0
    %113 = vmatpush1.bf16.msra.mxu0 0
    %114 = vmatprep.subr.bf16.mxu0 0
    %115 = vmatpush1.bf16.msra.mxu0 0
    %116 = vmatprep.subr.bf16.mxu0 0
    %117 = vmatpush1.bf16.msra.mxu0 0
    %118 = vmatprep.subr.bf16.mxu0 0
    %119 = vmatpush1.bf16.msra.mxu0 0
    %120 = vmatprep.subr.bf16.mxu0 0
    %121 = vmatpush1.bf16.msra.mxu0 0
    %122 = vmatprep.subr.bf16.mxu0 0
    %123 = vmatpush1.bf16.msra.mxu0 0
    %124 = vmatprep.subr.bf16.mxu0 0
    %125 = vmatpush1.bf16.msra.mxu0 0
    %126 = vmatprep.subr.bf16.mxu0 0
    %127 = vmatpush1.bf16.msra.mxu0 0
    %128 = vmatprep.mubr.bf16.mxu0 0
    %129 = vmatmul.mubr.bf16.gmra.mrb[0].mxu0 %v94
    %v130 = vpop.f32.mrb[0].mxu0
    %v131 = vadd.f32 %v75, %v130
    %v132 = vpop.f32.mrb[0].mxu0
    %v133 = vadd.f32 %v79, %v132
    %v134 = vpop.f32.mrb[0].mxu0
    %v135 = vpop.f32.mrb[0].mxu0
    %136 = vdwg.mxu0
    %v137 = vmax.f32 %v131, 0.0
    %v138 = vmax.f32 %v133, 0.0
    %v139 = vpack.c.bf16 %v137, %v137
    %v140 = vpack.c.bf16 %v138, %v138
    %v141 = vld [vmem:[#allocation2] sm:$0xf]
    %v142 = vld [vmem:[#allocation2 + $0x4] sm:$0xf]
    %v143 = vld [vmem:[#allocation2 + $0x8] sm:$0xf]
    %v144 = vld [vmem:[#allocation2 + $0xc] sm:$0xf]
    %v145 = vld [vmem:[#allocation2 + $0x10] sm:$0xf]
    %v146 = vld [vmem:[#allocation2 + $0x14] sm:$0xf]
    %v147 = vld [vmem:[#allocation2 + $0x18] sm:$0xf]
    %v148 = vld [vmem:[#allocation2 + $0x1c] sm:$0xf]
    %v149 = vld [vmem:[#allocation2 + $0x20] sm:$0xf]
    %v150 = vld [vmem:[#allocation2 + $0x24] sm:$0xf]
    %v151 = vld [vmem:[#allocation2 + $0x28] sm:$0xf]
    %v152 = vld [vmem:[#allocation2 + $0x2c] sm:$0xf]
    %v153 = vld [vmem:[#allocation2 + $0x30] sm:$0xf]
    %v154 = vld [vmem:[#allocation2 + $0x34] sm:$0xf]
    %v155 = vld [vmem:[#allocation2 + $0x38] sm:$0xf]
    %v156 = vld [vmem:[#allocation2 + $0x3c] sm:$0xf]
    %v157 = vld [vmem:[#allocation2 + $0x40] sm:$0xf]
    %v158 = vld [vmem:[#allocation2 + $0x44] sm:$0xf]
    %v159 = vld [vmem:[#allocation2 + $0x48] sm:$0xf]
    %v160 = vld [vmem:[#allocation2 + $0x4c] sm:$0xf]
    %v161 = vld [vmem:[#allocation2 + $0x50] sm:$0xf]
    %v162 = vld [vmem:[#allocation2 + $0x54] sm:$0xf]
    %v163 = vld [vmem:[#allocation2 + $0x58] sm:$0xf]
    %v164 = vld [vmem:[#allocation2 + $0x5c] sm:$0xf]
    %v165 = vld [vmem:[#allocation2 + $0x60] sm:$0xf]
    %v166 = vld [vmem:[#allocation2 + $0x64] sm:$0xf]
    %v167 = vld [vmem:[#allocation2 + $0x68] sm:$0xf]
    %v168 = vld [vmem:[#allocation2 + $0x6c] sm:$0xf]
    %v169 = vld [vmem:[#allocation2 + $0x70] sm:$0xf]
    %v170 = vld [vmem:[#allocation2 + $0x74] sm:$0xf]
    %v171 = vld [vmem:[#allocation2 + $0x78] sm:$0xf]
    %v172 = vld [vmem:[#allocation2 + $0x7c] sm:$0xf]
    %v173 = vld [vmem:[%s4] sm:$0x1]
    %v175 = vlaneseq
    %v176 = vshrl.u32 %v175, 7
    %v177 = vsub.s32 0, %v176
    %v178 = vrot.slane %v173, %v177
    %v212 = vunpack.c.l.b16 %v141
    %v213 = vunpack.c.l.b16 %v142
    %v214 = vunpack.c.l.b16 %v143
    %v215 = vunpack.c.l.b16 %v144
    %v216 = vunpack.c.l.b16 %v145
    %v217 = vunpack.c.l.b16 %v146
    %v218 = vunpack.c.l.b16 %v147
    %v219 = vunpack.c.l.b16 %v148
    %v220 = vunpack.c.l.b16 %v149
    %v221 = vunpack.c.l.b16 %v150
    %v222 = vunpack.c.l.b16 %v151
    %v223 = vunpack.c.l.b16 %v152
    %v224 = vunpack.c.l.b16 %v153
    %v225 = vunpack.c.l.b16 %v154
    %v226 = vunpack.c.l.b16 %v155
    %v227 = vunpack.c.l.b16 %v156
    %v228 = vunpack.c.l.b16 %v157
    %v229 = vunpack.c.l.b16 %v158
    %v230 = vunpack.c.l.b16 %v159
    %v231 = vunpack.c.l.b16 %v160
    %v232 = vunpack.c.l.b16 %v161
    %v233 = vunpack.c.l.b16 %v162
    %v234 = vunpack.c.l.b16 %v163
    %v235 = vunpack.c.l.b16 %v164
    %v236 = vunpack.c.l.b16 %v165
    %v237 = vunpack.c.l.b16 %v166
    %v238 = vunpack.c.l.b16 %v167
    %v239 = vunpack.c.l.b16 %v168
    %v240 = vunpack.c.l.b16 %v169
    %v241 = vunpack.c.l.b16 %v170
    %v242 = vunpack.c.l.b16 %v171
    %v243 = vunpack.c.l.b16 %v172
    %v244 = vpack.c.b16 %v213, %v212
    %v245 = vpack.c.b16 %v215, %v214
    %v246 = vpack.c.b16 %v217, %v216
    %v247 = vpack.c.b16 %v219, %v218
    %v248 = vpack.c.b16 %v221, %v220
    %v249 = vpack.c.b16 %v223, %v222
    %v250 = vpack.c.b16 %v225, %v224
    %v251 = vpack.c.b16 %v227, %v226
    %v252 = vpack.c.b16 %v229, %v228
    %v253 = vpack.c.b16 %v231, %v230
    %v254 = vpack.c.b16 %v233, %v232
    %v255 = vpack.c.b16 %v235, %v234
    %v256 = vpack.c.b16 %v237, %v236
    %v257 = vpack.c.b16 %v239, %v238
    %v258 = vpack.c.b16 %v241, %v240
    %v259 = vpack.c.b16 %v243, %v242
    %276 = vmatprep.subr.bf16.mxu0 0
    %277 = vmatpush1.bf16.msra.mxu0 %v244
    %278 = vmatprep.subr.bf16.mxu0 0
    %279 = vmatpush1.bf16.msra.mxu0 %v245
    %280 = vmatprep.subr.bf16.mxu0 0
    %281 = vmatpush1.bf16.msra.mxu0 %v246
    %282 = vmatprep.subr.bf16.mxu0 0
    %283 = vmatpush1.bf16.msra.mxu0 %v247
    %284 = vmatprep.subr.bf16.mxu0 0
    %285 = vmatpush1.bf16.msra.mxu0 %v248
    %286 = vmatprep.subr.bf16.mxu0 0
    %287 = vmatpush1.bf16.msra.mxu0 %v249
    %288 = vmatprep.subr.bf16.mxu0 0
    %289 = vmatpush1.bf16.msra.mxu0 %v250
    %290 = vmatprep.subr.bf16.mxu0 0
    %291 = vmatpush1.bf16.msra.mxu0 %v251
    %292 = vmatprep.subr.bf16.mxu0 0
    %293 = vmatpush1.bf16.msra.mxu0 %v252
    %294 = vmatprep.subr.bf16.mxu0 0
    %295 = vmatpush1.bf16.msra.mxu0 %v253
    %296 = vmatprep.subr.bf16.mxu0 0
    %297 = vmatpush1.bf16.msra.mxu0 %v254
    %298 = vmatprep.subr.bf16.mxu0 0
    %299 = vmatpush1.bf16.msra.mxu0 %v255
    %300 = vmatprep.subr.bf16.mxu0 0
    %301 = vmatpush1.bf16.msra.mxu0 %v256
    %302 = vmatprep.subr.bf16.mxu0 0
    %303 = vmatpush1.bf16.msra.mxu0 %v257
    %304 = vmatprep.subr.bf16.mxu0 0
    %305 = vmatpush1.bf16.msra.mxu0 %v258
    %306 = vmatprep.subr.bf16.mxu0 0
    %307 = vmatpush1.bf16.msra.mxu0 %v259
    %308 = vmatprep.mubr.bf16.mxu0 %v140
    %309 = vmatmul.mubr.bf16.gmra.mrb[0].mxu0 %v139
    %v310 = vpop.f32.mrb[0].mxu0
    %v311 = vadd.f32 %v178, %v310
    %v312 = vpop.f32.mrb[0].mxu0
    %v313 = vpop.f32.mrb[0].mxu0
    %v314 = vpop.f32.mrb[0].mxu0
    %315 = vdwg.mxu0
    %v316 = vmax.f32 %v311, 0.0
    %v317 = vpack.c.bf16 %v316, %v316
    %v318 = vld [vmem:[%s5] sm:$0xf]
    %v319 = vld [vmem:[%s5 + $0x4] sm:$0xf]
    %v320 = vld [vmem:[%s5 + $0x8] sm:$0xf]
    %v321 = vld [vmem:[%s5 + $0xc] sm:$0xf]
    %v322 = vld [vmem:[%s5 + $0x10] sm:$0xf]
    %v323 = vld [vmem:[%s5 + $0x14] sm:$0xf]
    %v324 = vld [vmem:[%s5 + $0x18] sm:$0xf]
    %v325 = vld [vmem:[%s5 + $0x1c] sm:$0xf]
    %v326 = vld [vmem:[%s5 + $0x20] sm:$0xf]
    %v327 = vld [vmem:[%s5 + $0x24] sm:$0xf]
    %v328 = vld [vmem:[%s5 + $0x28] sm:$0xf]
    %v329 = vld [vmem:[%s5 + $0x2c] sm:$0xf]
    %v330 = vld [vmem:[%s5 + $0x30] sm:$0xf]
    %v331 = vld [vmem:[%s5 + $0x34] sm:$0xf]
    %v332 = vld [vmem:[%s5 + $0x38] sm:$0xf]
    %v333 = vld [vmem:[%s5 + $0x3c] sm:$0xf]
    %v334 = vld [vmem:[%s6] sm:$0x1]
    %v336 = vlaneseq
    %v337 = vshrl.u32 %v336, 7
    %v338 = vsub.s32 0, %v337
    %v339 = vrot.slane %v334, %v338
    %v357 = vunpack.c.l.b16 %v318
    %v358 = vunpack.c.l.b16 %v319
    %v359 = vunpack.c.l.b16 %v320
    %v360 = vunpack.c.l.b16 %v321
    %v361 = vunpack.c.l.b16 %v322
    %v362 = vunpack.c.l.b16 %v323
    %v363 = vunpack.c.l.b16 %v324
    %v364 = vunpack.c.l.b16 %v325
    %v365 = vunpack.c.l.b16 %v326
    %v366 = vunpack.c.l.b16 %v327
    %v367 = vunpack.c.l.b16 %v328
    %v368 = vunpack.c.l.b16 %v329
    %v369 = vunpack.c.l.b16 %v330
    %v370 = vunpack.c.l.b16 %v331
    %v371 = vunpack.c.l.b16 %v332
    %v372 = vunpack.c.l.b16 %v333
    %v373 = vpack.c.b16 %v358, %v357
    %v374 = vpack.c.b16 %v360, %v359
    %v375 = vpack.c.b16 %v362, %v361
    %v376 = vpack.c.b16 %v364, %v363
    %v377 = vpack.c.b16 %v366, %v365
    %v378 = vpack.c.b16 %v368, %v367
    %v379 = vpack.c.b16 %v370, %v369
    %v380 = vpack.c.b16 %v372, %v371
    %389 = vmatprep.subr.bf16.mxu0 0
    %390 = vmatpush1.bf16.msra.mxu0 %v373
    %391 = vmatprep.subr.bf16.mxu0 0
    %392 = vmatpush1.bf16.msra.mxu0 %v374
    %393 = vmatprep.subr.bf16.mxu0 0
    %394 = vmatpush1.bf16.msra.mxu0 %v375
    %395 = vmatprep.subr.bf16.mxu0 0
    %396 = vmatpush1.bf16.msra.mxu0 %v376
    %397 = vmatprep.subr.bf16.mxu0 0
    %398 = vmatpush1.bf16.msra.mxu0 %v377
    %399 = vmatprep.subr.bf16.mxu0 0
    %400 = vmatpush1.bf16.msra.mxu0 %v378
    %401 = vmatprep.subr.bf16.mxu0 0
    %402 = vmatpush1.bf16.msra.mxu0 %v379
    %403 = vmatprep.subr.bf16.mxu0 0
    %404 = vmatpush1.bf16.msra.mxu0 %v380
    %405 = vmatprep.subr.bf16.mxu0 0
    %406 = vmatpush1.bf16.msra.mxu0 0
    %407 = vmatprep.subr.bf16.mxu0 0
    %408 = vmatpush1.bf16.msra.mxu0 0
    %409 = vmatprep.subr.bf16.mxu0 0
    %410 = vmatpush1.bf16.msra.mxu0 0
    %411 = vmatprep.subr.bf16.mxu0 0
    %412 = vmatpush1.bf16.msra.mxu0 0
    %413 = vmatprep.subr.bf16.mxu0 0
    %414 = vmatpush1.bf16.msra.mxu0 0
    %415 = vmatprep.subr.bf16.mxu0 0
    %416 = vmatpush1.bf16.msra.mxu0 0
    %417 = vmatprep.subr.bf16.mxu0 0
    %418 = vmatpush1.bf16.msra.mxu0 0
    %419 = vmatprep.subr.bf16.mxu0 0
    %420 = vmatpush1.bf16.msra.mxu0 0
    %421 = vmatprep.mubr.bf16.mxu0 0
    %422 = vmatmul.mubr.bf16.gmra.mrb[0].mxu0 %v317
    %v423 = vpop.f32.mrb[0].mxu0
    %v424 = vadd.f32 %v339, %v423
    %v425 = vpop.f32.mrb[0].mxu0
    %v426 = vpop.f32.mrb[0].mxu0
    %v427 = vpop.f32.mrb[0].mxu0
    %428 = vdwg.mxu0
    %v429 = vmax.f32 %v424, 0.0
    %v430 = vpack.c.bf16 %v429, %v429
    %v431 = vld [vmem:[#allocation4] sm:$0xf]
    %v432 = vld [vmem:[#allocation4 + $0x4] sm:$0xf]
    %v433 = vld [vmem:[#allocation4 + $0x8] sm:$0xf]
    %v434 = vld [vmem:[#allocation4 + $0xc] sm:$0xf]
    %v435 = vld [vmem:[#allocation4 + $0x10] sm:$0xf]
    %v436 = vld [vmem:[#allocation4 + $0x14] sm:$0xf]
    %v437 = vld [vmem:[#allocation4 + $0x18] sm:$0xf]
    %v438 = vld [vmem:[#allocation4 + $0x1c] sm:$0xf]
    %v439 = vld [vmem:[#allocation4 + $0x20] sm:$0xf]
    %v440 = vld [vmem:[#allocation4 + $0x24] sm:$0xf]
    %v441 = vld [vmem:[#allocation4 + $0x28] sm:$0xf]
    %v442 = vld [vmem:[#allocation4 + $0x2c] sm:$0xf]
    %v443 = vld [vmem:[#allocation4 + $0x30] sm:$0xf]
    %v444 = vld [vmem:[#allocation4 + $0x34] sm:$0xf]
    %v445 = vld [vmem:[#allocation4 + $0x38] sm:$0xf]
    %v446 = vld [vmem:[#allocation4 + $0x3c] sm:$0xf]
    %v447 = vld [vmem:[%s8] sm:$0x1]
    %v449 = vlaneseq
    %v450 = vshrl.u32 %v449, 7
    %v451 = vsub.s32 0, %v450
    %v452 = vrot.slane %v447, %v451
    %v470 = vunpack.c.l.b16 %v431
    %v471 = vunpack.c.l.b16 %v432
    %v472 = vunpack.c.l.b16 %v433
    %v473 = vunpack.c.l.b16 %v434
    %v474 = vunpack.c.l.b16 %v435
    %v475 = vunpack.c.l.b16 %v436
    %v476 = vunpack.c.l.b16 %v437
    %v477 = vunpack.c.l.b16 %v438
    %v478 = vunpack.c.l.b16 %v439
    %v479 = vunpack.c.l.b16 %v440
    %v480 = vunpack.c.l.b16 %v441
    %v481 = vunpack.c.l.b16 %v442
    %v482 = vunpack.c.l.b16 %v443
    %v483 = vunpack.c.l.b16 %v444
    %v484 = vunpack.c.l.b16 %v445
    %v485 = vunpack.c.l.b16 %v446
    %v486 = vpack.c.b16 %v471, %v470
    %v487 = vpack.c.b16 %v473, %v472
    %v488 = vpack.c.b16 %v475, %v474
    %v489 = vpack.c.b16 %v477, %v476
    %v490 = vpack.c.b16 %v479, %v478
    %v491 = vpack.c.b16 %v481, %v480
    %v492 = vpack.c.b16 %v483, %v482
    %v493 = vpack.c.b16 %v485, %v484
    %502 = vmatprep.subr.bf16.mxu0 0
    %503 = vmatpush1.bf16.msra.mxu0 %v486
    %504 = vmatprep.subr.bf16.mxu0 0
    %505 = vmatpush1.bf16.msra.mxu0 %v487
    %506 = vmatprep.subr.bf16.mxu0 0
    %507 = vmatpush1.bf16.msra.mxu0 %v488
    %508 = vmatprep.subr.bf16.mxu0 0
    %509 = vmatpush1.bf16.msra.mxu0 %v489
    %510 = vmatprep.subr.bf16.mxu0 0
    %511 = vmatpush1.bf16.msra.mxu0 %v490
    %512 = vmatprep.subr.bf16.mxu0 0
    %513 = vmatpush1.bf16.msra.mxu0 %v491
    %514 = vmatprep.subr.bf16.mxu0 0
    %515 = vmatpush1.bf16.msra.mxu0 %v492
    %516 = vmatprep.subr.bf16.mxu0 0
    %517 = vmatpush1.bf16.msra.mxu0 %v493
    %518 = vmatprep.subr.bf16.mxu0 0
    %519 = vmatpush1.bf16.msra.mxu0 0
    %520 = vmatprep.subr.bf16.mxu0 0
    %521 = vmatpush1.bf16.msra.mxu0 0
    %522 = vmatprep.subr.bf16.mxu0 0
    %523 = vmatpush1.bf16.msra.mxu0 0
    %524 = vmatprep.subr.bf16.mxu0 0
    %525 = vmatpush1.bf16.msra.mxu0 0
    %526 = vmatprep.subr.bf16.mxu0 0
    %527 = vmatpush1.bf16.msra.mxu0 0
    %528 = vmatprep.subr.bf16.mxu0 0
    %529 = vmatpush1.bf16.msra.mxu0 0
    %530 = vmatprep.subr.bf16.mxu0 0
    %531 = vmatpush1.bf16.msra.mxu0 0
    %532 = vmatprep.subr.bf16.mxu0 0
    %533 = vmatpush1.bf16.msra.mxu0 0
    %534 = vmatprep.mubr.bf16.mxu0 0
    %535 = vmatmul.mubr.bf16.gmra.mrb[0].mxu0 %v430
    %v536 = vpop.f32.mrb[0].mxu0
    %v537 = vadd.f32 %v452, %v536
    %v538 = vpop.f32.mrb[0].mxu0
    %v539 = vpop.f32.mrb[0].mxu0
    %v540 = vpop.f32.mrb[0].mxu0
    %541 = vdwg.mxu0
    %v542 = vmax.f32 %v537, 0.0
    %v543 = vpack.c.bf16 %v542, %v542
    %v544 = vld [vmem:[%s9] sm:$0xf]
    %v545 = vld [vmem:[%s9 + $0x4] sm:$0xf]
    %v546 = vld [vmem:[%s9 + $0x8] sm:$0xf]
    %v547 = vld [vmem:[%s9 + $0xc] sm:$0xf]
    %v548 = vld [vmem:[%s9 + $0x10] sm:$0xf]
    %v549 = vld [vmem:[%s9 + $0x14] sm:$0xf]
    %v550 = vld [vmem:[%s9 + $0x18] sm:$0xf]
    %v551 = vld [vmem:[%s9 + $0x1c] sm:$0xf]
    %v552 = vld [vmem:[%s9 + $0x20] sm:$0xf]
    %v553 = vld [vmem:[%s9 + $0x24] sm:$0xf]
    %v554 = vld [vmem:[%s9 + $0x28] sm:$0xf]
    %v555 = vld [vmem:[%s9 + $0x2c] sm:$0xf]
    %v556 = vld [vmem:[%s9 + $0x30] sm:$0xf]
    %v557 = vld [vmem:[%s9 + $0x34] sm:$0xf]
    %v558 = vld [vmem:[%s9 + $0x38] sm:$0xf]
    %v559 = vld [vmem:[%s9 + $0x3c] sm:$0xf]
    %v560 = vld [vmem:[%s10] sm:$0x1]
    %v562 = vlaneseq
    %v563 = vshrl.u32 %v562, 7
    %v564 = vsub.s32 0, %v563
    %v565 = vrot.slane %v560, %v564
    %v583 = vunpack.c.l.b16 %v544
    %v584 = vunpack.c.l.b16 %v545
    %v585 = vunpack.c.l.b16 %v546
    %v586 = vunpack.c.l.b16 %v547
    %v587 = vunpack.c.l.b16 %v548
    %v588 = vunpack.c.l.b16 %v549
    %v589 = vunpack.c.l.b16 %v550
    %v590 = vunpack.c.l.b16 %v551
    %v591 = vunpack.c.l.b16 %v552
    %v592 = vunpack.c.l.b16 %v553
    %v593 = vunpack.c.l.b16 %v554
    %v594 = vunpack.c.l.b16 %v555
    %v595 = vunpack.c.l.b16 %v556
    %v596 = vunpack.c.l.b16 %v557
    %v597 = vunpack.c.l.b16 %v558
    %v598 = vunpack.c.l.b16 %v559
    %v599 = vpack.c.b16 %v584, %v583
    %v600 = vpack.c.b16 %v586, %v585
    %v601 = vpack.c.b16 %v588, %v587
    %v602 = vpack.c.b16 %v590, %v589
    %v603 = vpack.c.b16 %v592, %v591
    %v604 = vpack.c.b16 %v594, %v593
    %v605 = vpack.c.b16 %v596, %v595
    %v606 = vpack.c.b16 %v598, %v597
    %615 = vmatprep.subr.bf16.mxu0 0
    %616 = vmatpush1.bf16.msra.mxu0 %v599
    %617 = vmatprep.subr.bf16.mxu0 0
    %618 = vmatpush1.bf16.msra.mxu0 %v600
    %619 = vmatprep.subr.bf16.mxu0 0
    %620 = vmatpush1.bf16.msra.mxu0 %v601
    %621 = vmatprep.subr.bf16.mxu0 0
    %622 = vmatpush1.bf16.msra.mxu0 %v602
    %623 = vmatprep.subr.bf16.mxu0 0
    %624 = vmatpush1.bf16.msra.mxu0 %v603
    %625 = vmatprep.subr.bf16.mxu0 0
    %626 = vmatpush1.bf16.msra.mxu0 %v604
    %627 = vmatprep.subr.bf16.mxu0 0
    %628 = vmatpush1.bf16.msra.mxu0 %v605
    %629 = vmatprep.subr.bf16.mxu0 0
    %630 = vmatpush1.bf16.msra.mxu0 %v606
    %631 = vmatprep.subr.bf16.mxu0 0
    %632 = vmatpush1.bf16.msra.mxu0 0
    %633 = vmatprep.subr.bf16.mxu0 0
    %634 = vmatpush1.bf16.msra.mxu0 0
    %635 = vmatprep.subr.bf16.mxu0 0
    %636 = vmatpush1.bf16.msra.mxu0 0
    %637 = vmatprep.subr.bf16.mxu0 0
    %638 = vmatpush1.bf16.msra.mxu0 0
    %639 = vmatprep.subr.bf16.mxu0 0
    %640 = vmatpush1.bf16.msra.mxu0 0
    %641 = vmatprep.subr.bf16.mxu0 0
    %642 = vmatpush1.bf16.msra.mxu0 0
    %643 = vmatprep.subr.bf16.mxu0 0
    %644 = vmatpush1.bf16.msra.mxu0 0
    %645 = vmatprep.subr.bf16.mxu0 0
    %646 = vmatpush1.bf16.msra.mxu0 0
    %647 = vmatprep.mubr.bf16.mxu0 0
    %648 = vmatmul.mubr.bf16.gmra.mrb[0].mxu0 %v543
    %v649 = vpop.f32.mrb[0].mxu0
    %v650 = vadd.f32 %v565, %v649
    %v651 = vpop.f32.mrb[0].mxu0
    %v652 = vpop.f32.mrb[0].mxu0
    %v653 = vpop.f32.mrb[0].mxu0
    %654 = vdwg.mxu0
    %v655 = vlaneseq
    %v656 = vand.u32 %v655, 127
    %v657 = vxor.u32 %v650, 2147483648
    %v658 = vmul.f32 %v657, 1.442695
    %v659 = vpow.pop %v658
    %v660 = vadd.f32 %v659, 1.0
    %v661 = vrcp.pop %v660
    %v662 = vmul.f32 1.0, %v661
    %v663 = vmul.f32 %v662, 0.5
    %v664 = vadd.f32 %v663, 0.5
    %vm665 = vcmp.eq.s32.totalorder %v656, 0
    %v666 = vsel %vm665, %v650, %v664
    %vm667 = vcmask 15360
    %668 = vst.msk [vmem:[%s11] sm:$0xff] %vm667, %v666
    // Predicated region
    $region54: #{gasflow_forward.1} parent=1 // pred_check
      _
    $region55: #{gasflow_forward.1} parent=1 // pred_check_branch
      %670 = sbr.rel (0) target = $region57
    $region56: #{gasflow_forward.1} parent=1 // pred_region
      _
    $region57: #{gasflow_forward.1} parent=1 // pred_fallthru
      _
    // Predicated region
    $region58: #{gasflow_forward.1} parent=1 // pred_check
      _
    $region59: #{gasflow_forward.1} parent=1 // pred_check_branch
      %672 = sbr.rel (0) target = $region61
    $region60: #{gasflow_forward.1} parent=1 // pred_region
      _
    $region61: #{gasflow_forward.1} parent=1 // pred_fallthru
      _
    %673 = vsyncpa [#allocation3], 1
    %674 = vsyncpa [#allocation5], 1

</llo_original>
